<compile_context>
chip_gen: v7x
topology: tpu7x:2x2x1
jax: 0.10.0
libtpu: 0.0.40
codegen_flags: <defaults>
</compile_context>

<pallas_src>
import jax
import jax.numpy as jnp
from jax.experimental import pallas as pl
from jax.experimental.pallas import tpu as pltpu


def _make_prelu_kernel(tc, c):
    """Kernel for one (1, tc, hw_tile) block; alpha is the full (c, 1) array."""

    def kernel(x_ref, a_ref, o_ref):
        x = x_ref[...]                                    # (1, tc, ht), x.dtype
        if tc == c:
            a = a_ref[...]                                # (tc, 1)
        else:
            ci = pl.program_id(1)
            start = pl.multiple_of(ci * tc, tc)           # tc % 8 == 0 here
            a = a_ref[pl.ds(start, tc), :]                # (tc, 1)
        # PReLU: x if x >= 0 else a * x (per-channel slope broadcast over HW).
        o_ref[...] = jnp.where(x >= 0, x, x * a[None, :, :]).astype(o_ref.dtype)

    return kernel


def _divisors(n):
    out = set()
    i = 1
    while i * i <= n:
        if n % i == 0:
            out.add(i)
            out.add(n // i)
        i += 1
    return out


def _vmem_capacity_bytes():
    try:
        return int(pltpu.get_tpu_info().vmem_capacity_bytes)
    except Exception:
        return 128 << 20


def _looks_like_v7x():
    # v7x exposes 64 MiB VMEM per TensorCore (v5e/v6e: 128 MiB).
    return _vmem_capacity_bytes() <= (64 << 20)


def _block_budget_bytes():
    # v7x: at ~3.2 TB/s a 4 MiB block's read+write is only ~2.5 us, so the
    # ~0.35 us per-grid-step overhead is >10%; use 8 MiB blocks there
    # (2 in + 2 out double-buffers ~= 32 MiB, safely under 64 MiB VMEM).
    # v5e/v6e: 4 MiB already sits at ~86% of the HBM roofline; keep headroom.
    return (8 << 20) if _looks_like_v7x() else (4 << 20)


def _choose_tiles(b, c, hw, itemsize, budget_bytes, min_grid_steps=8):
    """Pick (channel_tile, hw_tile).

    Legality (Mosaic block rule): each of the last two block dims must be a
    multiple of (8, 128) or span the full array dim.  Preference order:
      1. block fits the byte budget,
      2. enough grid steps (capped at min_grid_steps) for deep pipelining,
      3. biggest block,
      4. lane-dense last dim (hw_tile % 128 == 0), then longer stores.
    """
    sub = max(8, 32 // max(itemsize, 1))          # 8 f32 / 16 bf16 / 32 int8
    tc_cands = sorted({d for d in _divisors(c) if d % sub == 0} | {c})
    ht_cands = sorted({d for d in _divisors(hw) if d % 128 == 0} | {hw})

    best_key, best = None, None
    for tc in tc_cands:
        for ht in ht_cands:
            blk = tc * ht * itemsize
            steps = b * (c // tc) * (hw // ht)
            key = (blk <= budget_bytes, min(steps, min_grid_steps), blk,
                   ht % 128 == 0, ht)
            if best_key is None or key > best_key:
                best_key, best = key, (tc, ht)
    return best


def nbr_prelu(x, alpha, *, channel_tile=None, hw_tile=None, alias_input=False):
    """Per-channel PReLU.  x: (B, C, H, W); alpha: (C,) PReLU slopes."""
    b, c, h, w = x.shape
    hw = h * w
    itemsize = jnp.dtype(x.dtype).itemsize

    tc_auto, ht_auto = _choose_tiles(b, c, hw, itemsize, _block_budget_bytes())
    tc = channel_tile if channel_tile is not None else tc_auto
    ht = hw_tile if hw_tile is not None else ht_auto
    assert c % tc == 0 and hw % ht == 0

    grid = (b, c // tc, hw // ht)

    x_flat = x.reshape(b, c, hw)
    # Pre-cast alpha to x.dtype once (NOTE: PyTorch promotes the multiply to
    # the f32 weight dtype; for bf16 inputs this differs at ULP level only).
    a2 = alpha.reshape(c, 1).astype(x.dtype)

    block_bytes = tc * ht * itemsize
    vmem_limit = max(48 << 20, 4 * block_bytes + (2 << 20))

    cost = pl.CostEstimate(
        flops=3 * b * c * hw,                       # cmp + select + mul / elem
        transcendentals=0,
        bytes_accessed=2 * b * c * hw * itemsize + c * itemsize,
    )

    kernel = _make_prelu_kernel(tc, c)

    def run(dim_semantics):
        return pl.pallas_call(
            kernel,
            out_shape=jax.ShapeDtypeStruct((b, c, hw), x.dtype),
            grid_spec=pltpu.PrefetchScalarGridSpec(
                num_scalar_prefetch=0,
                grid=grid,
                in_specs=[
                    pl.BlockSpec((1, tc, ht), lambda bi, ci, hi: (bi, ci, hi)),
                    # Whole slope vector stays VMEM-resident across the grid.
                    pl.BlockSpec((c, 1), lambda bi, ci, hi: (0, 0)),
                ],
                out_specs=pl.BlockSpec((1, tc, ht),
                                       lambda bi, ci, hi: (bi, ci, hi)),
            ),
            compiler_params=pltpu.CompilerParams(
                dimension_semantics=dim_semantics,
                vmem_limit_bytes=vmem_limit,
            ),
            cost_estimate=cost,
            input_output_aliases=({0: 0} if alias_input else {}),
        )(x_flat, a2)

    plain = (pltpu.PARALLEL, pltpu.PARALLEL, pltpu.PARALLEL)
    if _looks_like_v7x() and grid[0] >= 2:
        # Split the outer (batch) axis across v7x's two TensorCores so both
        # cores' DMA engines stream HBM; fall back if rejected.
        try:
            out_flat = run((pltpu.CORE_PARALLEL, pltpu.PARALLEL, pltpu.PARALLEL))
        except Exception:
            out_flat = run(plain)
    else:
        out_flat = run(plain)

    return out_flat.reshape(b, c, h, w)


def nbr_prelu_ref(x, alpha):
    """Pure-JAX reference mirroring the PyTorch nBR forward (per-channel PReLU)."""
    a = alpha[None, :, None, None].astype(x.dtype)
    return jnp.where(x >= 0, x, x * a)


if __name__ == "__main__":
    B, C, H, W = 2, 4, 16, 16

    key = jax.random.PRNGKey(0)
    kx, ka = jax.random.split(key, 2)
    x = jax.random.normal(kx, (B, C, H, W), dtype=jnp.float32)
    # nn.PReLU default init is 0.25; perturb per-channel so the test actually
    # exercises the per-channel broadcast.
    alpha = 0.25 + 0.1 * jax.random.normal(ka, (C,), dtype=jnp.float32)

    out = jax.block_until_ready(nbr_prelu(x, alpha))
    ref = nbr_prelu_ref(x, alpha)

    assert out.shape == (B, C, H, W)
    assert jnp.allclose(out, ref, atol=1e-6, rtol=1e-6), "mismatch vs reference"

    print("KERNEL_OK")
</pallas_src>

<mosaic_0001>
module attributes {stable_mosaic.version = 11 : i64} {
  func.func @kernel(%arg0: i32, %arg1: i32, %arg2: i32, %arg3: memref<1x4x128xf32, #tpu.memory_space<vmem>>, %arg4: memref<4x1xf32, #tpu.memory_space<vmem>>, %arg5: memref<1x4x128xf32, #tpu.memory_space<vmem>>) attributes {dimension_semantics = [#tpu.dimension_semantics<parallel>, #tpu.dimension_semantics<parallel>, #tpu.dimension_semantics<parallel>], iteration_bounds = array<i64: 2, 1, 2>, scalar_prefetch = 0 : i64, scratch_operands = 0 : i64, tpu.core_type = #tpu.core_type<tc>, window_params = [{transform_indices = @transform_0, window_bounds = array<i64: 1, 4, 128>}, {pipeline_mode = #tpu.pipeline_mode<synchronous>, transform_indices = @transform_1, window_bounds = array<i64: 4, 1>}, {transform_indices = @transform_2, window_bounds = array<i64: 1, 4, 128>}]} {
    %c0 = arith.constant 0 : index
    %c0_0 = arith.constant 0 : index
    %c0_1 = arith.constant 0 : index
    %0 = vector.load %arg3[%c0, %c0_0, %c0_1] : memref<1x4x128xf32, #tpu.memory_space<vmem>>, vector<1x4x128xf32>
    %c0_2 = arith.constant 0 : index
    %c0_3 = arith.constant 0 : index
    %1 = vector.load %arg4[%c0_2, %c0_3] : memref<4x1xf32, #tpu.memory_space<vmem>>, vector<4x1xf32>
    %cst = arith.constant 0.000000e+00 : f32
    %2 = vector.broadcast %cst : f32 to vector<1x4x128xf32>
    %3 = arith.cmpf oge, %0, %2 : vector<1x4x128xf32>
    %4 = vector.shape_cast %1 : vector<4x1xf32> to vector<1x4x1xf32>
    %5 = vector.broadcast %4 : vector<1x4x1xf32> to vector<1x4x128xf32>
    %6 = arith.mulf %0, %5 : vector<1x4x128xf32>
    %7 = arith.select %3, %0, %6 : vector<1x4x128xi1>, vector<1x4x128xf32>
    %c0_4 = arith.constant 0 : index
    %c0_5 = arith.constant 0 : index
    %c0_6 = arith.constant 0 : index
    %8 = vector.load %arg5[%c0_4, %c0_5, %c0_6] : memref<1x4x128xf32, #tpu.memory_space<vmem>>, vector<1x4x128xf32>
    tpu.vector_store %arg5[%c0_4, %c0_5, %c0_6], %7 {strides = array<i32>} : memref<1x4x128xf32, #tpu.memory_space<vmem>>, vector<1x4x128xf32>,
    return
  }
  func.func @transform_0(%arg0: i32, %arg1: i32, %arg2: i32) -> (i32, i32, i32) {
    %c0_i32 = arith.constant 0 : i32
    return %arg0, %arg1, %arg2 : i32, i32, i32
  }
  func.func @transform_1(%arg0: i32, %arg1: i32, %arg2: i32) -> (i32, i32) {
    %c0_i32 = arith.constant 0 : i32
    %c0_i32_0 = arith.constant 0 : i32
    %c0_i32_1 = arith.constant 0 : i32
    return %c0_i32, %c0_i32_0 : i32, i32
  }
  func.func @transform_2(%arg0: i32, %arg1: i32, %arg2: i32) -> (i32, i32, i32) {
    %c0_i32 = arith.constant 0 : i32
    return %arg0, %arg1, %arg2 : i32, i32, i32
  }
}

</mosaic_0001>

<llo_original>
// kernel: tpu_custom_call.1
$region0: #{tpu_custom_call.1}
  #allocation0 [shape = 'u32[]', space=smem, size = 0x4, offset = 0x4, fixed_abs, tag = 'smem constant byte address 0x4 - core index']
  #allocation1 [shape = 'u32[144,128]{1,0:T(1,128)}', space=vmem, size = 0x12000, scoped, tag = 'internal scratch']
  %s0 = inlined_call_operand.hbm [shape: f32[2,4,256], index: 0, kind: input, shape index: {}]
  %s1 = inlined_call_operand.vmem [shape: f32[4,1], index: 1, kind: input, shape index: {}]
  %s2 = inlined_call_operand.hbm [shape: f32[2,4,256], index: 2, kind: output, shape index: {}]
  %s3 = sld [smem:[#allocation0]]
  $region45: #{tpu_custom_call.1} parent=0
    _
  %s5 = ssub.s32 1, %s3
  %s6 = scalar_select 0, %s5, %s3
  $region1: #{tpu_custom_call.1} parent=0
    #allocation2 [shape = 'u8[4096]{0}', space=vmem, size = 0x1000, scoped, tag = 'input window, operand 0']
    #allocation3 [shape = 's32[2]{0}', space=sflag, size = 0x8, scoped, tag = 'scoped memory for tpu_custom_call.1']
    #allocation4 [shape = 's32[2]{0}', space=sflag, size = 0x8, scoped, tag = 'scoped memory for tpu_custom_call.1']
    #allocation5 [shape = 'u8[4096]{0}', space=vmem, size = 0x1000, scoped, tag = 'output window, operand 0']
    %7 = vsyncpa [#allocation3], 0
    %s8 = scalar_lea.sflag [#allocation3], 1
    %9 = vsyncpa %s8, 0
    %10 = vsyncpa [#allocation4], 0
    %s11 = scalar_lea.sflag [#allocation4], 1
    %12 = vsyncpa %s11, 0
    loop: start=0, step=1, limit=6
    $region2: #{tpu_custom_call.1} parent=1 // loop_pre_header
      _
    $region3: #{tpu_custom_call.1} parent=1 // loop_header
      %s14 = sphi 0, %s18
      %p15 = scmp.ge.s32.totalorder %s14, 6
      %s21 = sphi 0, %s40
      %s22 = sphi 0, %s36
      %s23 = sphi 0, %s32
      %s24 = sphi 0, %s21
      %s25 = sphi 0, %s22
      %s26 = sphi 0, %s23
      %s27 = sphi 0, %s24
      %s28 = sphi 0, %s25
      %s29 = sphi 0, %s26
      %s47 = sphi 0, %s49
      %s50 = sphi 0, %s47
      %s51 = sphi 0, %s50
      %s67 = sphi 0, %s51
      %s71 = sphi 0, %s71
      %s73 = sphi 0, %s71
      %s74 = sphi 0, %s73
      %s88 = sphi 0, %s74
      %s98 = sphi 0, %s100
      %s101 = sphi 0, %s98
      %s102 = sphi 0, %s101
      %s118 = sphi 0, %s102
    $region4: #{tpu_custom_call.1} parent=1 // loop_header_branch
      %17 = sbr.rel (%p15) target = $region8
    $region5: #{tpu_custom_call.1} parent=1 // loop_body
      %s19 = ssub.s32 %s14, 1
      %s20 = ssub.s32 %s14, 2
      %s30 = sadd.s32 1, %s23
      %p31 = scmp.ge.s32.totalorder %s30, 2
      %s32 = scalar_select %p31, 0, %s30
      %s33 = sadd.s32 1, %s22
      %s34 = scalar_select %p31, %s33, %s22
      %p35 = scmp.ge.s32.totalorder %s34, 1
      %s36 = scalar_select %p35, 0, %s34
      %s37 = sadd.s32 1, %s21
      %s38 = scalar_select %p35, %s37, %s21
      %p39 = scmp.ge.s32.totalorder %s38, 2
      %s40 = scalar_select %p39, 0, %s38
      %s41 = ssub.s32 %s21, %s40
      %s42 = ssub.s32 %s22, %s36
      %s43 = sor.u32 %s41, %s42
      %s44 = ssub.s32 %s23, %s32
      %s45 = sor.u32 %s43, %s44
      %p46 = scmp.eq.s32.totalorder %s45, 0
      %s48 = sadd.s32 %s47, 1
      %s49 = scalar_select %p46, %s47, %s48
      %p52 = pneg %p46
      %p53 = scmp.eq.s32.totalorder %s14, 3
      %p54 = por %p52, %p53
      %p55 = scmp.ne.s32.totalorder %s47, %s50
      %p56 = scmp.eq.s32.totalorder %s14, 0
      %p57 = por %p55, %p56
      %p58 = scmp.ne.s32.totalorder %s47, %s50
      %p59 = scmp.eq.s32.totalorder %s19, 3
      %p60 = por %p58, %p59
      %p61 = scmp.ne.s32.totalorder %s50, %s51
      %p62 = scmp.eq.s32.totalorder %s19, 0
      %p63 = por %p61, %p62
      %p64 = scmp.ne.s32.totalorder %s50, %s51
      %p65 = scmp.eq.s32.totalorder %s20, 3
      %p66 = por %p64, %p65
      %p68 = scmp.ne.s32.totalorder %s51, %s67
      %p69 = scmp.eq.s32.totalorder %s20, 0
      %p70 = por %p68, %p69
      %s72 = sadd.s32 %s71, 1
      %p75 = scmp.eq.s32.totalorder %s14, 3
      %p76 = scmp.ne.s32.totalorder %s71, %s73
      %p77 = scmp.eq.s32.totalorder %s14, 0
      %p78 = por %p76, %p77
      %p79 = scmp.ne.s32.totalorder %s71, %s73
      %p80 = scmp.eq.s32.totalorder %s19, 3
      %p81 = por %p79, %p80
      %p82 = scmp.ne.s32.totalorder %s73, %s74
      %p83 = scmp.eq.s32.totalorder %s19, 0
      %p84 = por %p82, %p83
      %p85 = scmp.ne.s32.totalorder %s73, %s74
      %p86 = scmp.eq.s32.totalorder %s20, 3
      %p87 = por %p85, %p86
      %p89 = scmp.ne.s32.totalorder %s74, %s88
      %p90 = scmp.eq.s32.totalorder %s20, 0
      %p91 = por %p89, %p90
      %s92 = ssub.s32 %s21, %s40
      %s93 = ssub.s32 %s22, %s36
      %s94 = sor.u32 %s92, %s93
      %s95 = ssub.s32 %s23, %s32
      %s96 = sor.u32 %s94, %s95
      %p97 = scmp.eq.s32.totalorder %s96, 0
      %s99 = sadd.s32 %s98, 1
      %s100 = scalar_select %p97, %s98, %s99
      %p103 = pneg %p97
      %p104 = scmp.eq.s32.totalorder %s14, 3
      %p105 = por %p103, %p104
      %p106 = scmp.ne.s32.totalorder %s98, %s101
      %p107 = scmp.eq.s32.totalorder %s14, 0
      %p108 = por %p106, %p107
      %p109 = scmp.ne.s32.totalorder %s98, %s101
      %p110 = scmp.eq.s32.totalorder %s19, 3
      %p111 = por %p109, %p110
      %p112 = scmp.ne.s32.totalorder %s101, %s102
      %p113 = scmp.eq.s32.totalorder %s19, 0
      %p114 = por %p112, %p113
      %p115 = scmp.ne.s32.totalorder %s101, %s102
      %p116 = scmp.eq.s32.totalorder %s20, 3
      %p117 = por %p115, %p116
      %p119 = scmp.ne.s32.totalorder %s102, %s118
      %p120 = scmp.eq.s32.totalorder %s20, 0
      %p121 = por %p119, %p120
      %p122 = scmp.le.s32.totalorder 1, %s14
      %p123 = scmp.lt.s32.totalorder %s14, 5
      %p124 = pnand %p122, %p123
      %p125 = pneg %p124
      // Predicated region
      $region9: #{tpu_custom_call.1} parent=5 // pred_check
        _
      $region10: #{tpu_custom_call.1} parent=5 // pred_check_branch
        %127 = sbr.rel (%p124) target = $region12
      $region11: #{tpu_custom_call.1} parent=5 // pred_region
        %s128 = ssub.s32 %s14, 1
        // Predicated region
        $region13: #{tpu_custom_call.1} parent=11 // pred_check
          %p129 = pneg %p84
        $region14: #{tpu_custom_call.1} parent=11 // pred_check_branch
          %131 = sbr.rel (%p129) target = $region16
        $region15: #{tpu_custom_call.1} parent=11 // pred_region
          _
        $region16: #{tpu_custom_call.1} parent=11 // pred_fallthru
          _
      $region12: #{tpu_custom_call.1} parent=5 // pred_fallthru
        _
      %p132 = scmp.lt.s32.totalorder %s14, 4
      // Predicated region
      $region17: #{tpu_custom_call.1} parent=5 // pred_check
        %p133 = pneg %p132
      $region18: #{tpu_custom_call.1} parent=5 // pred_check_branch
        %135 = sbr.rel (%p133) target = $region20
      $region19: #{tpu_custom_call.1} parent=5 // pred_region
        // Predicated region
        $region21: #{tpu_custom_call.1} parent=19 // pred_check
          %p136 = pneg %p57
        $region22: #{tpu_custom_call.1} parent=19 // pred_check_branch
          %138 = sbr.rel (%p136) target = $region24
        $region23: #{tpu_custom_call.1} parent=19 // pred_region
          %s139 = sand.u32 %s47, 1
          %s140 = scalar_lea.sflag [#allocation3], %s139
          %s141 = sand.u32 %s47, 1
          %s142 = smul.addr %s141, 4
          %s143 = scalar_lea.vmem [#allocation2], %s142
          %s145 = ssub.s32 64, 64
          %146 = vsyncadd %s140, %s145
          %s147 = smul.addr %s22, 2
          %s148 = sadd.s32 %s23, %s147
          %s149 = smul.addr %s21, 2
          %s150 = sadd.s32 %s148, %s149
          %s151 = smul.addr %s150, 64
          %s152 = scalar_lea.hbm %s0, %s151
          %s154 = sshll.u32 %s143, 4
          %s155 = int_to_ptr.vmem [resolvable:$true] %s154
          %157 = dma.hbm_to_vmem [thread:$0]  %s152, 64, %s155, %s140
        $region24: #{tpu_custom_call.1} parent=19 // pred_fallthru
          _
      $region20: #{tpu_custom_call.1} parent=5 // pred_fallthru
        _
      %p158 = scmp.le.s32.totalorder 1, %s14
      %p159 = scmp.lt.s32.totalorder %s14, 5
      %p160 = pnand %p158, %p159
      %p161 = pneg %p160
      // Predicated region
      $region25: #{tpu_custom_call.1} parent=5 // pred_check
        _
      $region26: #{tpu_custom_call.1} parent=5 // pred_check_branch
        %163 = sbr.rel (%p160) target = $region28
      $region27: #{tpu_custom_call.1} parent=5 // pred_region
        %s164 = ssub.s32 %s14, 1
        %s165 = sand.u32 %s50, 1
        %s166 = scalar_lea.sflag [#allocation3], %s165
        %s167 = sand.u32 %s50, 1
        %s168 = smul.addr %s167, 4
        %s169 = scalar_lea.vmem [#allocation2], %s168
        // Predicated region
        $region29: #{tpu_custom_call.1} parent=27 // pred_check
          %p170 = pneg %p63
        $region30: #{tpu_custom_call.1} parent=27 // pred_check_branch
          %172 = sbr.rel (%p170) target = $region32
        $region31: #{tpu_custom_call.1} parent=27 // pred_region
          %173 = dma.done %s166, 64
        $region32: #{tpu_custom_call.1} parent=27 // pred_fallthru
          _
        %s174 = sand.u32 %s50, 1
        %s175 = scalar_lea.sflag [#allocation3], %s174
        %s176 = sand.u32 %s50, 1
        %s177 = smul.addr %s176, 4
        %s178 = scalar_lea.vmem [#allocation2], %s177
        %p179 = pneg %p63
        %p180 = pneg %p60
        %p181 = pneg %p84
        %p182 = pneg %p81
        %p183 = pneg %p114
        %p184 = pneg %p111
        %s185 = sand.u32 %s101, 1
        %s186 = scalar_lea.sflag [#allocation4], %s185
        %s187 = sand.u32 %s101, 1
        %s188 = smul.addr %s187, 4
        %s189 = scalar_lea.vmem [#allocation5], %s188
        %v190 = vld [vmem:[%s169] sm:$0xf]
        %v191 = vld [vmem:[%s1] sm:$0xf]
        %vm192 = vcmp.ge.f32.partialorder %v190, 0.0
        %194 = vset.pattern.permute.xlu0 0
        %195 = vperm.xlu0 %194, %v191
        %v196 = vpop.permute.xlu0 %195
        %v198 = vmul.f32 %v190, %v196
        %v199 = vsel %vm192, %v190, %v198
        %200 = vst [vmem:[%s189] sm:$0xf] %v199
        %s201 = sand.u32 %s101, 1
        %s202 = scalar_lea.sflag [#allocation4], %s201
        %s203 = sand.u32 %s101, 1
        %s204 = smul.addr %s203, 4
        %s205 = scalar_lea.vmem [#allocation5], %s204
        // Predicated region
        $region33: #{tpu_custom_call.1} parent=27 // pred_check
          %p206 = pneg %p111
        $region34: #{tpu_custom_call.1} parent=27 // pred_check_branch
          %208 = sbr.rel (%p206) target = $region36
        $region35: #{tpu_custom_call.1} parent=27 // pred_region
          %s210 = ssub.s32 64, 64
          %211 = vsyncadd %s202, %s210
          %s212 = smul.addr %s25, 2
          %s213 = sadd.s32 %s26, %s212
          %s214 = smul.addr %s24, 2
          %s215 = sadd.s32 %s213, %s214
          %s216 = smul.addr %s215, 64
          %s217 = scalar_lea.hbm %s2, %s216
          %s219 = sshll.u32 %s205, 4
          %s220 = int_to_ptr.vmem [resolvable:$true] %s219
          %222 = dma.vmem_to_hbm [thread:$0]  %s220, 64, %s217, %s202
        $region36: #{tpu_custom_call.1} parent=27 // pred_fallthru
          _
      $region28: #{tpu_custom_call.1} parent=5 // pred_fallthru
        _
      %p223 = scmp.le.s32.totalorder 2, %s14
      // Predicated region
      $region37: #{tpu_custom_call.1} parent=5 // pred_check
        %p224 = pneg %p223
      $region38: #{tpu_custom_call.1} parent=5 // pred_check_branch
        %226 = sbr.rel (%p224) target = $region40
      $region39: #{tpu_custom_call.1} parent=5 // pred_region
        %s227 = ssub.s32 %s14, 2
        // Predicated region
        $region41: #{tpu_custom_call.1} parent=39 // pred_check
          %p228 = pneg %p117
        $region42: #{tpu_custom_call.1} parent=39 // pred_check_branch
          %230 = sbr.rel (%p228) target = $region44
        $region43: #{tpu_custom_call.1} parent=39 // pred_region
          %s231 = sand.u32 %s102, 1
          %s232 = scalar_lea.sflag [#allocation4], %s231
          %s233 = sand.u32 %s102, 1
          %s234 = smul.addr %s233, 4
          %s235 = scalar_lea.vmem [#allocation5], %s234
          %236 = dma.done %s232, 64
        $region44: #{tpu_custom_call.1} parent=39 // pred_fallthru
          _
      $region40: #{tpu_custom_call.1} parent=5 // pred_fallthru
        _
    $region6: #{tpu_custom_call.1} parent=1 // loop_footer
      %s18 = sadd.s32 1, %s14
    $region7: #{tpu_custom_call.1} parent=1 // loop_footer_branch
      %13 = sbr.rel target = $region3
    $region8: #{tpu_custom_call.1} parent=1 // loop_exit
      _
    %237 = vsyncpa [#allocation3], 1
    %s238 = scalar_lea.sflag [#allocation3], 1
    %239 = vsyncpa %s238, 1
    %240 = vsyncpa [#allocation4], 1
    %s241 = scalar_lea.sflag [#allocation4], 1
    %242 = vsyncpa %s241, 1

</llo_original>
